<compile_context>
chip_gen: v5e
topology: v5e:2x2
jax: 0.10.0
libtpu: 0.0.40
codegen_flags: <defaults>
</compile_context>

<pallas_src>
import functools

import jax
import jax.numpy as jnp
from jax.experimental import pallas as pl
from jax.experimental.pallas import tpu as pltpu

_SUBLANE = 8
_LANE = 128


def _round_up(x, m):
    return ((x + m - 1) // m) * m


def _vmem_capacity_bytes():
    """Per-core VMEM capacity; conservative 64 MiB (v7x) fallback."""
    try:
        info = pltpu.get_tpu_info()
        for name in ("vmem_capacity_bytes", "vmem_bytes", "vmem_size_bytes"):
            v = getattr(info, name, None)
            if v:
                return int(v)
    except Exception:
        pass
    return 64 * 1024 * 1024


def _pick_batch_tile(batch, hid_dim, dtype_bytes):
    """Pick the batch tile TB from a small fixed set.

    Generation-aware: 128-MiB-VMEM parts (v5e/v6e) get a bigger budget / row
    cap than v7x (64 MiB).  TB is additionally capped near batch/4 so that
    medium/large batches always produce >= 4 grid steps (dual-TC sharding on
    v7x + something for the double-buffered DMA pipeline to overlap).
    """
    big_vmem = _vmem_capacity_bytes() >= 96 * 1024 * 1024      # v5e / v6e
    budget = (24 if big_vmem else 8) * 1024 * 1024
    row_cap = 2048 if big_vmem else 1024

    per_row = 2 * hid_dim * dtype_bytes                        # double-buffered x
    row_cap = min(row_cap,
                  max(_LANE, (budget // max(per_row, 1)) // _SUBLANE * _SUBLANE))

    tb = _LANE                                                 # 128-row floor
    for cand in (256, 512, 1024, 2048):
        if cand <= row_cap and batch >= 4 * cand:
            tb = cand
    return tb


def _linear_kernel(x_ref, w_ref, b_ref, o_ref):
    # x_ref: [TB, H]      current batch tile (streamed, double-buffered)
    # w_ref: [H, O_pad]   resident across the grid (constant index_map)
    # b_ref: [1, O_pad]   resident
    # o_ref: [TB, O_pad]  narrow (sublane-padded) output for small heads
    acc = jnp.dot(x_ref[...], w_ref[...], preferred_element_type=jnp.float32)
    o_ref[...] = (acc + b_ref[...].astype(jnp.float32)).astype(o_ref.dtype)


@functools.partial(jax.jit, static_argnames=("tb",))
def _linear_pallas(x, w_pad, b_pad, *, tb):
    B, H = x.shape
    o_pad = w_pad.shape[1]
    grid = (pl.cdiv(B, tb),)            # no batch padding -> no jnp.pad HBM copy

    db = x.dtype.itemsize
    wb = w_pad.dtype.itemsize

    cost = pl.CostEstimate(
        flops=2 * B * H * o_pad,
        transcendentals=0,
        bytes_accessed=B * H * db + H * o_pad * wb + B * o_pad * db,
    )

    # Double-buffered x & out tiles + resident W/b, 2x headroom.  TB sizing is
    # already generation-aware, so this stays well under physical VMEM on v7x.
    need = (2 * tb * H * db            # streamed x (double-buffered)
            + 2 * tb * o_pad * db      # out tiles (double-buffered)
            + (H + 1) * o_pad * wb)    # resident W + b
    vmem_bytes = min(max(2 * need, 4 * 1024 * 1024), 100 * 1024 * 1024)

    return pl.pallas_call(
        _linear_kernel,
        out_shape=jax.ShapeDtypeStruct((B, o_pad), x.dtype),
        grid_spec=pltpu.PrefetchScalarGridSpec(
            num_scalar_prefetch=0,
            grid=grid,
            in_specs=[
                # Streamed x tile.  If profiling shows exposed DMA at step
                # boundaries, sweep pipeline_mode=pl.Buffered(3) here.
                pl.BlockSpec((tb, H), lambda i: (i, 0)),
                pl.BlockSpec((H, o_pad), lambda i: (0, 0)),   # resident W
                pl.BlockSpec((1, o_pad), lambda i: (0, 0)),   # resident b
            ],
            out_specs=pl.BlockSpec((tb, o_pad), lambda i: (i, 0)),
        ),
        compiler_params=pltpu.CompilerParams(
            # Batch tiles are independent -> shardable across v7x's 2 TCs.
            dimension_semantics=("parallel",),
            vmem_limit_bytes=vmem_bytes,
        ),
        cost_estimate=cost,
    )(x, w_pad, b_pad)


class ClassificationHead:
    """JAX/Pallas port of the PyTorch ClassificationHead."""

    def __init__(self, hid_dim, n_classes, key):
        if n_classes == 2:
            out_features = 1
            self.binary = True
        else:
            out_features = n_classes
            self.binary = False
        self.hid_dim = hid_dim
        self.out_features = out_features

        # Deterministic init mimicking nn.Linear's uniform(-1/sqrt(fan_in), ...)
        kw, kb = jax.random.split(key)
        bound = 1.0 / float(hid_dim) ** 0.5
        w = jax.random.uniform(kw, (out_features, hid_dim),
                               minval=-bound, maxval=bound, dtype=jnp.float32)
        b = jax.random.uniform(kb, (out_features,),
                               minval=-bound, maxval=bound, dtype=jnp.float32)

        # Unpadded reference layout (x @ W.T + b  ==  x @ w_t + b_row).
        self.w_t = jnp.transpose(w)                  # [H, O]
        self.b = b.reshape(1, out_features)          # [1, O]

        # Small heads: pad O only to a sublane multiple (8) -> tiny writeback
        # DMA (masked vst inside the kernel is hidden under DMA).  Wide heads
        # (O >= 128) keep lane-dense 128-multiple padding.  Padded columns are
        # ZERO so they never contaminate results.
        if out_features >= _LANE:
            o_pad = _round_up(out_features, _LANE)
        else:
            o_pad = _round_up(out_features, _SUBLANE)
        self.o_pad = o_pad
        self.w_pad = (jnp.zeros((hid_dim, o_pad), jnp.float32)
                      .at[:, :out_features].set(self.w_t))
        self.b_pad = (jnp.zeros((1, o_pad), jnp.float32)
                      .at[:, :out_features].set(self.b))
        self._param_cache = {}   # activation dtype -> (w_pad, b_pad)

    def _params_for(self, dtype):
        dtype = jnp.dtype(dtype)
        if dtype == jnp.dtype(jnp.float32):
            return self.w_pad, self.b_pad
        cached = self._param_cache.get(dtype)
        if cached is None:
            # Match activation dtype (e.g. bf16) for the native MXU fast path;
            # accumulation stays f32 inside the kernel.
            cached = (self.w_pad.astype(dtype), self.b_pad.astype(dtype))
            self._param_cache[dtype] = cached
        return cached

    def __call__(self, x):
        B, H = x.shape
        assert H == self.hid_dim

        w_pad, b_pad = self._params_for(x.dtype)
        tb = _pick_batch_tile(B, H, x.dtype.itemsize)

        y_pad = _linear_pallas(x, w_pad, b_pad, tb=tb)   # (B, o_pad)
        y = y_pad[:, :self.out_features]
        return (y, self.binary)


if __name__ == "__main__":
    key = jax.random.PRNGKey(0)
    k_x, k_params_multi, k_params_bin = jax.random.split(key, 3)

    batch, hid_dim = 2, 32

    # NOTE: at these toy shapes a standalone kernel is launch-overhead bound;
    # the tiling above is what makes it scale to production batches.
    x = jax.random.normal(k_x, (batch, hid_dim), dtype=jnp.float32)

    # Multi-class head (n_classes = 4)
    head_multi = ClassificationHead(hid_dim, 4, k_params_multi)
    y_multi, binary_multi = head_multi(x)
    jax.block_until_ready(y_multi)

    # Binary head (n_classes = 2 -> single logit)
    head_bin = ClassificationHead(hid_dim, 2, k_params_bin)
    y_bin, binary_bin = head_bin(x)
    jax.block_until_ready(y_bin)

    # Reference check against plain JAX
    ref_multi = x @ head_multi.w_t + head_multi.b
    ref_bin = x @ head_bin.w_t + head_bin.b
    assert y_multi.shape == (batch, 4) and binary_multi is False
    assert y_bin.shape == (batch, 1) and binary_bin is True
    assert jnp.allclose(y_multi, ref_multi, atol=1e-5)
    assert jnp.allclose(y_bin, ref_bin, atol=1e-5)

    print("KERNEL_OK")
</pallas_src>

<mosaic_0001>
module attributes {stable_mosaic.version = 11 : i64} {
  func.func @_linear_kernel(%arg0: i32, %arg1: memref<128x32xf32, #tpu.memory_space<vmem>>, %arg2: memref<32x8xf32, #tpu.memory_space<vmem>>, %arg3: memref<1x8xf32, #tpu.memory_space<vmem>>, %arg4: memref<128x8xf32, #tpu.memory_space<vmem>>) attributes {dimension_semantics = [#tpu.dimension_semantics<parallel>], iteration_bounds = array<i64: 1>, scalar_prefetch = 0 : i64, scratch_operands = 0 : i64, tpu.core_type = #tpu.core_type<tc>, window_params = [{transform_indices = @transform_0, window_bounds = array<i64: 128, 32>}, {pipeline_mode = #tpu.pipeline_mode<synchronous>, transform_indices = @transform_1, window_bounds = array<i64: 32, 8>}, {pipeline_mode = #tpu.pipeline_mode<synchronous>, transform_indices = @transform_2, window_bounds = array<i64: 1, 8>}, {transform_indices = @transform_3, window_bounds = array<i64: 128, 8>}]} {
    %c0 = arith.constant 0 : index
    %c0_0 = arith.constant 0 : index
    %0 = vector.load %arg1[%c0, %c0_0] : memref<128x32xf32, #tpu.memory_space<vmem>>, vector<128x32xf32>
    %c0_1 = arith.constant 0 : index
    %c0_2 = arith.constant 0 : index
    %1 = vector.load %arg2[%c0_1, %c0_2] : memref<32x8xf32, #tpu.memory_space<vmem>>, vector<32x8xf32>
    %cst = arith.constant dense<0.000000e+00> : vector<128x8xf32>
    %2 = tpu.matmul %0, %1, %cst {dimension_numbers = #tpu.dot_dimension_numbers<[1], [0], [0], [1], [0, 0, 1, 1], [], []>} : vector<128x32xf32>, vector<32x8xf32>, vector<128x8xf32> -> vector<128x8xf32>
    %c0_3 = arith.constant 0 : index
    %c0_4 = arith.constant 0 : index
    %3 = vector.load %arg3[%c0_3, %c0_4] : memref<1x8xf32, #tpu.memory_space<vmem>>, vector<1x8xf32>
    %4 = vector.broadcast %3 : vector<1x8xf32> to vector<128x8xf32>
    %5 = arith.addf %2, %4 : vector<128x8xf32>
    %c0_5 = arith.constant 0 : index
    %c0_6 = arith.constant 0 : index
    %6 = vector.load %arg4[%c0_5, %c0_6] : memref<128x8xf32, #tpu.memory_space<vmem>>, vector<128x8xf32>
    tpu.vector_store %arg4[%c0_5, %c0_6], %5 {strides = array<i32>} : memref<128x8xf32, #tpu.memory_space<vmem>>, vector<128x8xf32>,
    return
  }
  func.func @transform_0(%arg0: i32) -> (i32, i32) {
    %c0_i32 = arith.constant 0 : i32
    %c0_i32_0 = arith.constant 0 : i32
    return %arg0, %c0_i32 : i32, i32
  }
  func.func @transform_1(%arg0: i32) -> (i32, i32) {
    %c0_i32 = arith.constant 0 : i32
    %c0_i32_0 = arith.constant 0 : i32
    %c0_i32_1 = arith.constant 0 : i32
    return %c0_i32, %c0_i32_0 : i32, i32
  }
  func.func @transform_2(%arg0: i32) -> (i32, i32) {
    %c0_i32 = arith.constant 0 : i32
    %c0_i32_0 = arith.constant 0 : i32
    %c0_i32_1 = arith.constant 0 : i32
    return %c0_i32, %c0_i32_0 : i32, i32
  }
  func.func @transform_3(%arg0: i32) -> (i32, i32) {
    %c0_i32 = arith.constant 0 : i32
    %c0_i32_0 = arith.constant 0 : i32
    return %arg0, %c0_i32 : i32, i32
  }
}

</mosaic_0001>

<llo_original>
// kernel: _linear_pallas.1
$region0: #{_linear_pallas.1}
  #allocation0 [shape = 'u32[]', space=smem, size = 0x4, offset = 0x4, fixed_abs, tag = 'smem constant byte address 0x4 - core index']
  #allocation1 [shape = 'u32[72,128]{1,0:T(1,128)}', space=vmem, size = 0x9000, scoped, tag = 'internal scratch']
  %s0 = inlined_call_operand.vmem [shape: f32[2,32], index: 0, kind: input, shape index: {}]
  %s1 = inlined_call_operand.vmem [shape: f32[32,8], index: 1, kind: input, shape index: {}]
  %s2 = inlined_call_operand.vmem [shape: f32[1,8], index: 2, kind: input, shape index: {}]
  %s3 = inlined_call_operand.hbm [shape: f32[2,8], index: 3, kind: output, shape index: {}]
  %s4 = sld [smem:[#allocation0]]
  $region22: #{_linear_pallas.1} parent=0
    _
  %s6 = ssub.s32 1, %s4
  %s7 = scalar_select 0, %s6, %s4
  $region1: #{_linear_pallas.1} parent=0
    #allocation2 [shape = 'u8[65536]{0}', space=vmem, size = 0x10000, scoped, tag = 'output window, operand 0, single buffered']
    #allocation3 [shape = 's32[1]{0}', space=sflag, size = 0x4, scoped, tag = 'scoped memory for _linear_pallas.1']
    %8 = vsyncpa [#allocation3], 0
    // Predicated region
    $region2: #{_linear_pallas.1} parent=1 // pred_check
      _
    $region3: #{_linear_pallas.1} parent=1 // pred_check_branch
      %10 = sbr.rel (0) target = $region5
    $region4: #{_linear_pallas.1} parent=1 // pred_region
      _
    $region5: #{_linear_pallas.1} parent=1 // pred_fallthru
      _
    // Predicated region
    $region6: #{_linear_pallas.1} parent=1 // pred_check
      _
    $region7: #{_linear_pallas.1} parent=1 // pred_check_branch
      %12 = sbr.rel (0) target = $region9
    $region8: #{_linear_pallas.1} parent=1 // pred_region
      _
    $region9: #{_linear_pallas.1} parent=1 // pred_fallthru
      _
    // Predicated region
    $region10: #{_linear_pallas.1} parent=1 // pred_check
      _
    $region11: #{_linear_pallas.1} parent=1 // pred_check_branch
      %14 = sbr.rel (0) target = $region13
    $region12: #{_linear_pallas.1} parent=1 // pred_region
      _
    $region13: #{_linear_pallas.1} parent=1 // pred_fallthru
      _
    %v15 = vld [vmem:[%s0] sm:$0xff]
    %v16 = vld [vmem:[%s0 + $0x8] sm:$0xff]
    %v17 = vld [vmem:[%s0 + $0x10] sm:$0xff]
    %v18 = vld [vmem:[%s0 + $0x18] sm:$0xff]
    %v19 = vld [vmem:[%s0 + $0x20] sm:$0xff]
    %v20 = vld [vmem:[%s0 + $0x28] sm:$0xff]
    %v21 = vld [vmem:[%s0 + $0x30] sm:$0xff]
    %v22 = vld [vmem:[%s0 + $0x38] sm:$0xff]
    %v23 = vld [vmem:[%s0 + $0x40] sm:$0xff]
    %v24 = vld [vmem:[%s0 + $0x48] sm:$0xff]
    %v25 = vld [vmem:[%s0 + $0x50] sm:$0xff]
    %v26 = vld [vmem:[%s0 + $0x58] sm:$0xff]
    %v27 = vld [vmem:[%s0 + $0x60] sm:$0xff]
    %v28 = vld [vmem:[%s0 + $0x68] sm:$0xff]
    %v29 = vld [vmem:[%s0 + $0x70] sm:$0xff]
    %v30 = vld [vmem:[%s0 + $0x78] sm:$0xff]
    %v31 = vld [vmem:[%s1] sm:$0xff]
    %v32 = vld [vmem:[%s1 + $0x8] sm:$0xff]
    %v33 = vld [vmem:[%s1 + $0x10] sm:$0xff]
    %v34 = vld [vmem:[%s1 + $0x18] sm:$0xff]
    %v35 = vld [vmem:[%s2] sm:$0x1]
    %v37 = vperm.slane %v35, 0
    %vm39 = vcmask 261120
    %v41 = vsel %vm39, %v15, 0
    %v44 = vsel %vm39, %v16, 0
    %v47 = vsel %vm39, %v17, 0
    %v50 = vsel %vm39, %v18, 0
    %v53 = vsel %vm39, %v19, 0
    %v56 = vsel %vm39, %v20, 0
    %v59 = vsel %vm39, %v21, 0
    %v62 = vsel %vm39, %v22, 0
    %v65 = vsel %vm39, %v23, 0
    %v68 = vsel %vm39, %v24, 0
    %v71 = vsel %vm39, %v25, 0
    %v74 = vsel %vm39, %v26, 0
    %v77 = vsel %vm39, %v27, 0
    %v80 = vsel %vm39, %v28, 0
    %v83 = vsel %vm39, %v29, 0
    %v86 = vsel %vm39, %v30, 0
    %88 = vmatpush.msra.mxu0 0.0
    %89 = vmatpush.msra.mxu0 0.0
    %90 = vmatpush.msra.mxu0 0.0
    %91 = vmatpush.msra.mxu0 0.0
    %92 = vmatpush.msra.mxu0 0.0
    %93 = vmatpush.msra.mxu0 0.0
    %94 = vmatpush.msra.mxu0 0.0
    %95 = vmatpush.msra.mxu0 0.0
    %96 = vmatpush.msra.mxu0 0.0
    %97 = vmatpush.msra.mxu0 0.0
    %98 = vmatpush.msra.mxu0 0.0
    %99 = vmatpush.msra.mxu0 0.0
    %100 = vmatpush.msra.mxu0 %v34
    %101 = vmatpush.msra.mxu0 %v33
    %102 = vmatpush.msra.mxu0 %v32
    %103 = vmatpush.msra.mxu0 %v31
    %104 = vmatmul.f32.gmra.mxu0 %v41
    %v105 = vpop.f32.mrf.mxu0
    %v106 = vadd.f32 %v37, %v105
    %107 = vmatmul.f32.gmra.mxu0 %v44
    %v108 = vpop.f32.mrf.mxu0
    %v109 = vadd.f32 %v37, %v108
    %110 = vmatmul.f32.gmra.mxu0 %v47
    %v111 = vpop.f32.mrf.mxu0
    %v112 = vadd.f32 %v37, %v111
    %113 = vmatmul.f32.gmra.mxu0 %v50
    %v114 = vpop.f32.mrf.mxu0
    %v115 = vadd.f32 %v37, %v114
    %116 = vmatmul.f32.gmra.mxu0 %v53
    %v117 = vpop.f32.mrf.mxu0
    %v118 = vadd.f32 %v37, %v117
    %119 = vmatmul.f32.gmra.mxu0 %v56
    %v120 = vpop.f32.mrf.mxu0
    %v121 = vadd.f32 %v37, %v120
    %122 = vmatmul.f32.gmra.mxu0 %v59
    %v123 = vpop.f32.mrf.mxu0
    %v124 = vadd.f32 %v37, %v123
    %125 = vmatmul.f32.gmra.mxu0 %v62
    %v126 = vpop.f32.mrf.mxu0
    %v127 = vadd.f32 %v37, %v126
    %128 = vmatmul.f32.gmra.mxu0 %v65
    %v129 = vpop.f32.mrf.mxu0
    %v130 = vadd.f32 %v37, %v129
    %131 = vmatmul.f32.gmra.mxu0 %v68
    %v132 = vpop.f32.mrf.mxu0
    %v133 = vadd.f32 %v37, %v132
    %134 = vmatmul.f32.gmra.mxu0 %v71
    %v135 = vpop.f32.mrf.mxu0
    %v136 = vadd.f32 %v37, %v135
    %137 = vmatmul.f32.gmra.mxu0 %v74
    %v138 = vpop.f32.mrf.mxu0
    %v139 = vadd.f32 %v37, %v138
    %140 = vmatmul.f32.gmra.mxu0 %v77
    %v141 = vpop.f32.mrf.mxu0
    %v142 = vadd.f32 %v37, %v141
    %143 = vmatmul.f32.gmra.mxu0 %v80
    %v144 = vpop.f32.mrf.mxu0
    %v145 = vadd.f32 %v37, %v144
    %146 = vmatmul.f32.gmra.mxu0 %v83
    %v147 = vpop.f32.mrf.mxu0
    %v148 = vadd.f32 %v37, %v147
    %149 = vmatmul.f32.gmra.mxu0 %v86
    %v150 = vpop.f32.mrf.mxu0
    %v151 = vadd.f32 %v37, %v150
    %152 = vdwg.mxu0
    %vm153 = vcmask 64512
    %154 = vst.msk [vmem:[#allocation2] sm:$0xff] %vm153, %v106
    %155 = vst.msk [vmem:[#allocation2 + $0x8] sm:$0xff] %vm153, %v109
    %156 = vst.msk [vmem:[#allocation2 + $0x10] sm:$0xff] %vm153, %v112
    %157 = vst.msk [vmem:[#allocation2 + $0x18] sm:$0xff] %vm153, %v115
    %158 = vst.msk [vmem:[#allocation2 + $0x20] sm:$0xff] %vm153, %v118
    %159 = vst.msk [vmem:[#allocation2 + $0x28] sm:$0xff] %vm153, %v121
    %160 = vst.msk [vmem:[#allocation2 + $0x30] sm:$0xff] %vm153, %v124
    %161 = vst.msk [vmem:[#allocation2 + $0x38] sm:$0xff] %vm153, %v127
    %162 = vst.msk [vmem:[#allocation2 + $0x40] sm:$0xff] %vm153, %v130
    %163 = vst.msk [vmem:[#allocation2 + $0x48] sm:$0xff] %vm153, %v133
    %164 = vst.msk [vmem:[#allocation2 + $0x50] sm:$0xff] %vm153, %v136
    %165 = vst.msk [vmem:[#allocation2 + $0x58] sm:$0xff] %vm153, %v139
    %166 = vst.msk [vmem:[#allocation2 + $0x60] sm:$0xff] %vm153, %v142
    %167 = vst.msk [vmem:[#allocation2 + $0x68] sm:$0xff] %vm153, %v145
    %168 = vst.msk [vmem:[#allocation2 + $0x70] sm:$0xff] %vm153, %v148
    %169 = vst.msk [vmem:[#allocation2 + $0x78] sm:$0xff] %vm153, %v151
    // Predicated region
    $region14: #{_linear_pallas.1} parent=1 // pred_check
      _
    $region15: #{_linear_pallas.1} parent=1 // pred_check_branch
      %171 = sbr.rel (0) target = $region17
    $region16: #{_linear_pallas.1} parent=1 // pred_region
      %173 = vsyncadd [#allocation3], 2016
      %s174 = sshll.u32 [#allocation2], 4
      %s175 = int_to_ptr.vmem [resolvable:$true] %s174
      %s176 = sshll.u32 %s3, 4
      %s177 = int_to_ptr.hbm [resolvable:$true] %s176
      %182 = dma.vmem_to_hbm [thread:$0]  %s175, 32, %s177, [#allocation3], 32, 32, 2
    $region17: #{_linear_pallas.1} parent=1 // pred_fallthru
      _
    // Predicated region
    $region18: #{_linear_pallas.1} parent=1 // pred_check
      _
    $region19: #{_linear_pallas.1} parent=1 // pred_check_branch
      %184 = sbr.rel (0) target = $region21
    $region20: #{_linear_pallas.1} parent=1 // pred_region
      %186 = dma.done [#allocation3], 2048
    $region21: #{_linear_pallas.1} parent=1 // pred_fallthru
      _
    %187 = vsyncpa [#allocation3], 1

</llo_original>
